<compile_context>
chip_gen: v6e
topology: v6e:2x2x1
jax: 0.10.0
libtpu: 0.0.40
codegen_flags: <defaults>
</compile_context>

<pallas_src>
import jax
import jax.numpy as jnp
from jax.experimental import pallas as pl
from jax.experimental.pallas import tpu as pltpu


D_IN, D_HID, D_OUT = 4, 64, 2
ROW_PACK = 2                      # batch rows packed per 128-lane vreg row
D_IN_P = ROW_PACK * D_IN          # 8
D_HID_P = ROW_PACK * D_HID        # 128
D_OUT_P = ROW_PACK * D_OUT        # 4
ROW_ALIGN = 8 * ROW_PACK          # batch rows per 8-sublane packed group


def _cdiv(a, b):
    return (a + b - 1) // b


def _round_up(n, m):
    return _cdiv(n, m) * m


def dense_net_kernel(x_ref,
                     w_in_ref, b_in_ref,
                     w1_ref, b1_ref,
                     w2_ref, b2_ref,
                     w3_ref, b3_ref,
                     w_out_ref, b_out_ref,
                     o_ref):
    # Layer 1 folded into the packed layout: (TBp, 8) @ (8, 128) block-diag.
    h = jnp.dot(x_ref[...], w_in_ref[...], preferred_element_type=jnp.float32)
    h = jnp.maximum(h + b_in_ref[...], 0.0)

    # Three hidden layers: lane-dense (TBp, 128) @ (128, 128) block-diag + ReLU.
    for w_ref, b_ref in ((w1_ref, b1_ref), (w2_ref, b2_ref), (w3_ref, b3_ref)):
        h = jnp.dot(h.astype(jnp.bfloat16), w_ref[...],
                    preferred_element_type=jnp.float32)
        h = jnp.maximum(h + b_ref[...], 0.0)

    # Output layer: (TBp, 128) @ (128, 4) block-diag, no activation.
    y = jnp.dot(h.astype(jnp.bfloat16), w_out_ref[...],
                preferred_element_type=jnp.float32)
    o_ref[...] = (y + b_out_ref[...]).astype(o_ref.dtype)


def _block_diag2(w):
    """blockdiag(W, W) for the 2-row lane-packing scheme."""
    z = jnp.zeros_like(w)
    top = jnp.concatenate([w, z], axis=1)
    bot = jnp.concatenate([z, w], axis=1)
    return jnp.concatenate([top, bot], axis=0)


def _pack_params(params):
    bf = jnp.bfloat16
    f32 = jnp.float32
    return (
        _block_diag2(params["w_in"]).astype(bf),            # (8, 128)
        jnp.tile(params["b_in"], (1, ROW_PACK)).astype(f32),  # (1, 128)
        _block_diag2(params["w1"]).astype(bf),               # (128, 128)
        jnp.tile(params["b1"], (1, ROW_PACK)).astype(f32),
        _block_diag2(params["w2"]).astype(bf),
        jnp.tile(params["b2"], (1, ROW_PACK)).astype(f32),
        _block_diag2(params["w3"]).astype(bf),
        jnp.tile(params["b3"], (1, ROW_PACK)).astype(f32),
        _block_diag2(params["w_out"]).astype(bf),             # (128, 4)
        jnp.tile(params["b_out"], (1, ROW_PACK)).astype(f32),  # (1, 4)
    )


def dense_net_forward(x, params, *, block_b=4096):
    """x: (B, 4) float32. Returns (B, 2) float32."""
    B = x.shape[0]
    B_aligned = _round_up(max(B, ROW_ALIGN), ROW_ALIGN)

    # Guarantee >= 2 grid steps when the batch allows it (v7x megacore sharding),
    # otherwise cap the tile at block_b (multiple of 16 original rows).
    if B_aligned > ROW_ALIGN:
        tb_half = _round_up(_cdiv(B_aligned, 2), ROW_ALIGN)
    else:
        tb_half = ROW_ALIGN
    TB = max(ROW_ALIGN, min(_round_up(block_b, ROW_ALIGN), tb_half))
    B_pad = _round_up(B_aligned, TB)

    if B_pad != B:
        x = jnp.pad(x, ((0, B_pad - B), (0, 0)))

    # Lane-dense packed input: two batch rows per packed row -> (B_pad/2, 8), bf16.
    x_packed = x.reshape(B_pad // ROW_PACK, D_IN_P).astype(jnp.bfloat16)

    packed = _pack_params(params)
    operands = (x_packed,) + packed

    def x_map(i):
        return (i, 0)

    def resident(i):          # weights/biases: same block every grid step
        return (0, 0)

    TBp = TB // ROW_PACK
    in_specs = [pl.BlockSpec((TBp, D_IN_P), x_map)] + [
        pl.BlockSpec(op.shape, resident) for op in packed
    ]
    out_spec = pl.BlockSpec((TBp, D_OUT_P), x_map)

    Bp = B_pad // ROW_PACK
    flops = 2 * Bp * (D_IN_P * D_HID_P + 3 * D_HID_P * D_HID_P + D_HID_P * D_OUT_P)
    bytes_accessed = (
        int(x_packed.size) * x_packed.dtype.itemsize
        + sum(int(op.size) * op.dtype.itemsize for op in packed)
        + Bp * D_OUT_P * 4
    )

    out_packed = pl.pallas_call(
        dense_net_kernel,
        out_shape=jax.ShapeDtypeStruct((Bp, D_OUT_P), jnp.float32),
        grid_spec=pltpu.PrefetchScalarGridSpec(
            num_scalar_prefetch=0,
            grid=(B_pad // TB,),
            in_specs=in_specs,
            out_specs=out_spec,
        ),
        compiler_params=pltpu.CompilerParams(
            dimension_semantics=("parallel",),
        ),
        cost_estimate=pl.CostEstimate(
            flops=flops, transcendentals=0, bytes_accessed=int(bytes_accessed)),
    )(*operands)

    # (B_pad/2, 4) -> (B_pad, 2) is a contiguous metadata reshape; slicing only
    # strips batch padding (no lane padding is ever written to HBM).
    return out_packed.reshape(B_pad, D_OUT)[:B]


# ------------------------- init / reference / test -------------------------

def xavier_normal(key, fan_out, fan_in):
    # torch.nn.init.xavier_normal_: std = sqrt(2/(fan_in+fan_out)), shape (out, in)
    std = (2.0 / (fan_in + fan_out)) ** 0.5
    return std * jax.random.normal(key, (fan_out, fan_in), dtype=jnp.float32)


def bias_init(key, fan_in, fan_out):
    # torch default bias init: U(-1/sqrt(fan_in), 1/sqrt(fan_in)), shape (out,)
    bound = 1.0 / (fan_in ** 0.5)
    return jax.random.uniform(key, (fan_out,), dtype=jnp.float32,
                              minval=-bound, maxval=bound)


def make_params(key):
    keys = jax.random.split(key, 10)
    # PyTorch layout (out, in) -> transpose to (in, out); biases kept 2D (1, out).
    w_in = xavier_normal(keys[0], D_HID, D_IN)
    w1 = xavier_normal(keys[1], D_HID, D_HID)
    w2 = xavier_normal(keys[2], D_HID, D_HID)
    w3 = xavier_normal(keys[3], D_HID, D_HID)
    w_out = xavier_normal(keys[4], D_OUT, D_HID)
    return {
        "w_in": w_in.T, "b_in": bias_init(keys[5], D_IN, D_HID)[None, :],
        "w1": w1.T,     "b1": bias_init(keys[6], D_HID, D_HID)[None, :],
        "w2": w2.T,     "b2": bias_init(keys[7], D_HID, D_HID)[None, :],
        "w3": w3.T,     "b3": bias_init(keys[8], D_HID, D_HID)[None, :],
        "w_out": w_out.T, "b_out": bias_init(keys[9], D_HID, D_OUT)[None, :],
    }


def reference_forward_bf16(x, params):
    """Pure-JAX reference using the same bf16-operand / f32-accumulate math."""
    def mm(a, w):
        return jnp.dot(a.astype(jnp.bfloat16), w.astype(jnp.bfloat16),
                       preferred_element_type=jnp.float32)
    h = jnp.maximum(mm(x, params["w_in"]) + params["b_in"], 0.0)
    for k in ("1", "2", "3"):
        h = jnp.maximum(mm(h, params["w" + k]) + params["b" + k], 0.0)
    return mm(h, params["w_out"]) + params["b_out"]


def reference_forward_f32(x, params):
    """Faithful f32 reference (HIGHEST-precision dots)."""
    h = jnp.maximum(
        jnp.dot(x, params["w_in"], precision="highest") + params["b_in"], 0.0)
    for k in ("1", "2", "3"):
        h = jnp.maximum(
            jnp.dot(h, params["w" + k], precision="highest") + params["b" + k], 0.0)
    return jnp.dot(h, params["w_out"], precision="highest") + params["b_out"]


if __name__ == "__main__":
    key = jax.random.PRNGKey(0)
    k_params, k_x1, k_x2, k_x3 = jax.random.split(key, 4)
    params = make_params(k_params)

    # Small primary test (single grid step).
    B = 8
    x = jax.random.normal(k_x1, (B, D_IN), dtype=jnp.float32)
    out = jax.block_until_ready(dense_net_forward(x, params))
    assert out.shape == (B, D_OUT)
    assert jnp.allclose(out, reference_forward_bf16(x, params),
                        atol=1e-4, rtol=1e-4), "mismatch vs bf16-math reference"
    assert jnp.allclose(out, reference_forward_f32(x, params),
                        atol=5e-2, rtol=5e-2), "mismatch vs f32 reference"

    # Multi-tile test: non-multiple batch + small tile -> exercises grid pipelining,
    # batch padding, lane-packing, and the packed-output reshape/slice.
    B2 = 200
    x2 = jax.random.normal(k_x2, (B2, D_IN), dtype=jnp.float32)
    out2 = jax.block_until_ready(dense_net_forward(x2, params, block_b=64))
    assert out2.shape == (B2, D_OUT)
    assert jnp.allclose(out2, reference_forward_bf16(x2, params),
                        atol=1e-4, rtol=1e-4), "mismatch (tiled) vs reference"

    # Default-tile test: batch auto-split into >=2 grid steps (v7x megacore path).
    B3 = 3000
    x3 = jax.random.normal(k_x3, (B3, D_IN), dtype=jnp.float32)
    out3 = jax.block_until_ready(dense_net_forward(x3, params))
    assert out3.shape == (B3, D_OUT)
    assert jnp.allclose(out3, reference_forward_bf16(x3, params),
                        atol=1e-4, rtol=1e-4), "mismatch (2-step) vs reference"

    print("KERNEL_OK")
</pallas_src>

<mosaic_0001>
module attributes {stable_mosaic.version = 11 : i64} {
  func.func @dense_net_kernel(%arg0: i32, %arg1: memref<8x8xbf16, #tpu.memory_space<vmem>>, %arg2: memref<8x128xbf16, #tpu.memory_space<vmem>>, %arg3: memref<1x128xf32, #tpu.memory_space<vmem>>, %arg4: memref<128x128xbf16, #tpu.memory_space<vmem>>, %arg5: memref<1x128xf32, #tpu.memory_space<vmem>>, %arg6: memref<128x128xbf16, #tpu.memory_space<vmem>>, %arg7: memref<1x128xf32, #tpu.memory_space<vmem>>, %arg8: memref<128x128xbf16, #tpu.memory_space<vmem>>, %arg9: memref<1x128xf32, #tpu.memory_space<vmem>>, %arg10: memref<128x4xbf16, #tpu.memory_space<vmem>>, %arg11: memref<1x4xf32, #tpu.memory_space<vmem>>, %arg12: memref<8x4xf32, #tpu.memory_space<vmem>>) attributes {dimension_semantics = [#tpu.dimension_semantics<parallel>], iteration_bounds = array<i64: 1>, scalar_prefetch = 0 : i64, scratch_operands = 0 : i64, tpu.core_type = #tpu.core_type<tc>, window_params = [{transform_indices = @transform_0, window_bounds = array<i64: 8, 8>}, {pipeline_mode = #tpu.pipeline_mode<synchronous>, transform_indices = @transform_1, window_bounds = array<i64: 8, 128>}, {pipeline_mode = #tpu.pipeline_mode<synchronous>, transform_indices = @transform_2, window_bounds = array<i64: 1, 128>}, {pipeline_mode = #tpu.pipeline_mode<synchronous>, transform_indices = @transform_3, window_bounds = array<i64: 128, 128>}, {pipeline_mode = #tpu.pipeline_mode<synchronous>, transform_indices = @transform_4, window_bounds = array<i64: 1, 128>}, {pipeline_mode = #tpu.pipeline_mode<synchronous>, transform_indices = @transform_5, window_bounds = array<i64: 128, 128>}, {pipeline_mode = #tpu.pipeline_mode<synchronous>, transform_indices = @transform_6, window_bounds = array<i64: 1, 128>}, {pipeline_mode = #tpu.pipeline_mode<synchronous>, transform_indices = @transform_7, window_bounds = array<i64: 128, 128>}, {pipeline_mode = #tpu.pipeline_mode<synchronous>, transform_indices = @transform_8, window_bounds = array<i64: 1, 128>}, {pipeline_mode = #tpu.pipeline_mode<synchronous>, transform_indices = @transform_9, window_bounds = array<i64: 128, 4>}, {pipeline_mode = #tpu.pipeline_mode<synchronous>, transform_indices = @transform_10, window_bounds = array<i64: 1, 4>}, {transform_indices = @transform_11, window_bounds = array<i64: 8, 4>}]} {
    %c0 = arith.constant 0 : index
    %c0_0 = arith.constant 0 : index
    %0 = vector.load %arg1[%c0, %c0_0] : memref<8x8xbf16, #tpu.memory_space<vmem>>, vector<8x8xbf16>
    %c0_1 = arith.constant 0 : index
    %c0_2 = arith.constant 0 : index
    %1 = vector.load %arg2[%c0_1, %c0_2] : memref<8x128xbf16, #tpu.memory_space<vmem>>, vector<8x128xbf16>
    %cst = arith.constant dense<0.000000e+00> : vector<8x128xf32>
    %2 = tpu.matmul %0, %1, %cst {dimension_numbers = #tpu.dot_dimension_numbers<[1], [0], [0], [1], [0, 0, 1, 1], [], []>} : vector<8x8xbf16>, vector<8x128xbf16>, vector<8x128xf32> -> vector<8x128xf32>
    %c0_3 = arith.constant 0 : index
    %c0_4 = arith.constant 0 : index
    %3 = vector.load %arg3[%c0_3, %c0_4] : memref<1x128xf32, #tpu.memory_space<vmem>>, vector<1x128xf32>
    %4 = vector.broadcast %3 : vector<1x128xf32> to vector<8x128xf32>
    %5 = arith.addf %2, %4 : vector<8x128xf32>
    %cst_5 = arith.constant 0.000000e+00 : f32
    %6 = vector.broadcast %cst_5 : f32 to vector<8x128xf32>
    %7 = arith.maximumf %5, %6 : vector<8x128xf32>
    %8 = arith.truncf %7 : vector<8x128xf32> to vector<8x128xbf16>
    %c0_6 = arith.constant 0 : index
    %c0_7 = arith.constant 0 : index
    %9 = vector.load %arg4[%c0_6, %c0_7] : memref<128x128xbf16, #tpu.memory_space<vmem>>, vector<128x128xbf16>
    %cst_8 = arith.constant dense<0.000000e+00> : vector<8x128xf32>
    %10 = tpu.matmul %8, %9, %cst_8 {dimension_numbers = #tpu.dot_dimension_numbers<[1], [0], [0], [1], [0, 0, 1, 1], [], []>} : vector<8x128xbf16>, vector<128x128xbf16>, vector<8x128xf32> -> vector<8x128xf32>
    %c0_9 = arith.constant 0 : index
    %c0_10 = arith.constant 0 : index
    %11 = vector.load %arg5[%c0_9, %c0_10] : memref<1x128xf32, #tpu.memory_space<vmem>>, vector<1x128xf32>
    %12 = vector.broadcast %11 : vector<1x128xf32> to vector<8x128xf32>
    %13 = arith.addf %10, %12 : vector<8x128xf32>
    %cst_11 = arith.constant 0.000000e+00 : f32
    %14 = vector.broadcast %cst_11 : f32 to vector<8x128xf32>
    %15 = arith.maximumf %13, %14 : vector<8x128xf32>
    %16 = arith.truncf %15 : vector<8x128xf32> to vector<8x128xbf16>
    %c0_12 = arith.constant 0 : index
    %c0_13 = arith.constant 0 : index
    %17 = vector.load %arg6[%c0_12, %c0_13] : memref<128x128xbf16, #tpu.memory_space<vmem>>, vector<128x128xbf16>
    %cst_14 = arith.constant dense<0.000000e+00> : vector<8x128xf32>
    %18 = tpu.matmul %16, %17, %cst_14 {dimension_numbers = #tpu.dot_dimension_numbers<[1], [0], [0], [1], [0, 0, 1, 1], [], []>} : vector<8x128xbf16>, vector<128x128xbf16>, vector<8x128xf32> -> vector<8x128xf32>
    %c0_15 = arith.constant 0 : index
    %c0_16 = arith.constant 0 : index
    %19 = vector.load %arg7[%c0_15, %c0_16] : memref<1x128xf32, #tpu.memory_space<vmem>>, vector<1x128xf32>
    %20 = vector.broadcast %19 : vector<1x128xf32> to vector<8x128xf32>
    %21 = arith.addf %18, %20 : vector<8x128xf32>
    %cst_17 = arith.constant 0.000000e+00 : f32
    %22 = vector.broadcast %cst_17 : f32 to vector<8x128xf32>
    %23 = arith.maximumf %21, %22 : vector<8x128xf32>
    %24 = arith.truncf %23 : vector<8x128xf32> to vector<8x128xbf16>
    %c0_18 = arith.constant 0 : index
    %c0_19 = arith.constant 0 : index
    %25 = vector.load %arg8[%c0_18, %c0_19] : memref<128x128xbf16, #tpu.memory_space<vmem>>, vector<128x128xbf16>
    %cst_20 = arith.constant dense<0.000000e+00> : vector<8x128xf32>
    %26 = tpu.matmul %24, %25, %cst_20 {dimension_numbers = #tpu.dot_dimension_numbers<[1], [0], [0], [1], [0, 0, 1, 1], [], []>} : vector<8x128xbf16>, vector<128x128xbf16>, vector<8x128xf32> -> vector<8x128xf32>
    %c0_21 = arith.constant 0 : index
    %c0_22 = arith.constant 0 : index
    %27 = vector.load %arg9[%c0_21, %c0_22] : memref<1x128xf32, #tpu.memory_space<vmem>>, vector<1x128xf32>
    %28 = vector.broadcast %27 : vector<1x128xf32> to vector<8x128xf32>
    %29 = arith.addf %26, %28 : vector<8x128xf32>
    %cst_23 = arith.constant 0.000000e+00 : f32
    %30 = vector.broadcast %cst_23 : f32 to vector<8x128xf32>
    %31 = arith.maximumf %29, %30 : vector<8x128xf32>
    %32 = arith.truncf %31 : vector<8x128xf32> to vector<8x128xbf16>
    %c0_24 = arith.constant 0 : index
    %c0_25 = arith.constant 0 : index
    %33 = vector.load %arg10[%c0_24, %c0_25] : memref<128x4xbf16, #tpu.memory_space<vmem>>, vector<128x4xbf16>
    %cst_26 = arith.constant dense<0.000000e+00> : vector<8x4xf32>
    %34 = tpu.matmul %32, %33, %cst_26 {dimension_numbers = #tpu.dot_dimension_numbers<[1], [0], [0], [1], [0, 0, 1, 1], [], []>} : vector<8x128xbf16>, vector<128x4xbf16>, vector<8x4xf32> -> vector<8x4xf32>
    %c0_27 = arith.constant 0 : index
    %c0_28 = arith.constant 0 : index
    %35 = vector.load %arg11[%c0_27, %c0_28] : memref<1x4xf32, #tpu.memory_space<vmem>>, vector<1x4xf32>
    %36 = vector.broadcast %35 : vector<1x4xf32> to vector<8x4xf32>
    %37 = arith.addf %34, %36 : vector<8x4xf32>
    %c0_29 = arith.constant 0 : index
    %c0_30 = arith.constant 0 : index
    %38 = vector.load %arg12[%c0_29, %c0_30] : memref<8x4xf32, #tpu.memory_space<vmem>>, vector<8x4xf32>
    tpu.vector_store %arg12[%c0_29, %c0_30], %37 {strides = array<i32>} : memref<8x4xf32, #tpu.memory_space<vmem>>, vector<8x4xf32>,
    return
  }
  func.func @transform_0(%arg0: i32) -> (i32, i32) {
    %c0_i32 = arith.constant 0 : i32
    %c0_i32_0 = arith.constant 0 : i32
    return %arg0, %c0_i32 : i32, i32
  }
  func.func @transform_1(%arg0: i32) -> (i32, i32) {
    %c0_i32 = arith.constant 0 : i32
    %c0_i32_0 = arith.constant 0 : i32
    %c0_i32_1 = arith.constant 0 : i32
    return %c0_i32, %c0_i32_0 : i32, i32
  }
  func.func @transform_2(%arg0: i32) -> (i32, i32) {
    %c0_i32 = arith.constant 0 : i32
    %c0_i32_0 = arith.constant 0 : i32
    %c0_i32_1 = arith.constant 0 : i32
    return %c0_i32, %c0_i32_0 : i32, i32
  }
  func.func @transform_3(%arg0: i32) -> (i32, i32) {
    %c0_i32 = arith.constant 0 : i32
    %c0_i32_0 = arith.constant 0 : i32
    %c0_i32_1 = arith.constant 0 : i32
    return %c0_i32, %c0_i32_0 : i32, i32
  }
  func.func @transform_4(%arg0: i32) -> (i32, i32) {
    %c0_i32 = arith.constant 0 : i32
    %c0_i32_0 = arith.constant 0 : i32
    %c0_i32_1 = arith.constant 0 : i32
    return %c0_i32, %c0_i32_0 : i32, i32
  }
  func.func @transform_5(%arg0: i32) -> (i32, i32) {
    %c0_i32 = arith.constant 0 : i32
    %c0_i32_0 = arith.constant 0 : i32
    %c0_i32_1 = arith.constant 0 : i32
    return %c0_i32, %c0_i32_0 : i32, i32
  }
  func.func @transform_6(%arg0: i32) -> (i32, i32) {
    %c0_i32 = arith.constant 0 : i32
    %c0_i32_0 = arith.constant 0 : i32
    %c0_i32_1 = arith.constant 0 : i32
    return %c0_i32, %c0_i32_0 : i32, i32
  }
  func.func @transform_7(%arg0: i32) -> (i32, i32) {
    %c0_i32 = arith.constant 0 : i32
    %c0_i32_0 = arith.constant 0 : i32
    %c0_i32_1 = arith.constant 0 : i32
    return %c0_i32, %c0_i32_0 : i32, i32
  }
  func.func @transform_8(%arg0: i32) -> (i32, i32) {
    %c0_i32 = arith.constant 0 : i32
    %c0_i32_0 = arith.constant 0 : i32
    %c0_i32_1 = arith.constant 0 : i32
    return %c0_i32, %c0_i32_0 : i32, i32
  }
  func.func @transform_9(%arg0: i32) -> (i32, i32) {
    %c0_i32 = arith.constant 0 : i32
    %c0_i32_0 = arith.constant 0 : i32
    %c0_i32_1 = arith.constant 0 : i32
    return %c0_i32, %c0_i32_0 : i32, i32
  }
  func.func @transform_10(%arg0: i32) -> (i32, i32) {
    %c0_i32 = arith.constant 0 : i32
    %c0_i32_0 = arith.constant 0 : i32
    %c0_i32_1 = arith.constant 0 : i32
    return %c0_i32, %c0_i32_0 : i32, i32
  }
  func.func @transform_11(%arg0: i32) -> (i32, i32) {
    %c0_i32 = arith.constant 0 : i32
    %c0_i32_0 = arith.constant 0 : i32
    return %arg0, %c0_i32 : i32, i32
  }
}

</mosaic_0001>

<llo_original>
// kernel: tpu_custom_call.1
$region0: #{tpu_custom_call.1}
  #allocation0 [shape = 'u32[]', space=smem, size = 0x4, offset = 0x4, fixed_abs, tag = 'smem constant byte address 0x4 - core index']
  #allocation1 [shape = 'u32[144,128]{1,0:T(1,128)}', space=vmem, size = 0x12000, scoped, tag = 'internal scratch']
  %s0 = inlined_call_operand.vmem [shape: bf16[8,8], index: 0, kind: input, shape index: {}]
  %s1 = inlined_call_operand.hbm [shape: bf16[8,128], index: 1, kind: input, shape index: {}]
  %s2 = inlined_call_operand.vmem [shape: f32[1,128], index: 2, kind: input, shape index: {}]
  %s3 = inlined_call_operand.vmem [shape: bf16[128,128], index: 3, kind: input, shape index: {}]
  %s4 = inlined_call_operand.vmem [shape: f32[1,128], index: 4, kind: input, shape index: {}]
  %s5 = inlined_call_operand.hbm [shape: bf16[128,128], index: 5, kind: input, shape index: {}]
  %s6 = inlined_call_operand.vmem [shape: f32[1,128], index: 6, kind: input, shape index: {}]
  %s7 = inlined_call_operand.hbm [shape: bf16[128,128], index: 7, kind: input, shape index: {}]
  %s8 = inlined_call_operand.vmem [shape: f32[1,128], index: 8, kind: input, shape index: {}]
  %s9 = inlined_call_operand.vmem [shape: bf16[128,4], index: 9, kind: input, shape index: {}]
  %s10 = inlined_call_operand.vmem [shape: f32[1,4], index: 10, kind: input, shape index: {}]
  %s11 = inlined_call_operand.vmem [shape: f32[8,4], index: 11, kind: output, shape index: {}]
  %s12 = sld [smem:[#allocation0]]
  $region66: #{tpu_custom_call.1} parent=0
    _
  %s14 = ssub.s32 1, %s12
  %s15 = scalar_select 0, %s14, %s12
  $region1: #{tpu_custom_call.1} parent=0
    #allocation2 [shape = 'u8[2048]{0}', space=vmem, size = 0x800, scoped, tag = 'input window, operand 1, single buffered']
    #allocation3 [shape = 's32[1]{0}', space=sflag, size = 0x4, scoped, tag = 'scoped memory for tpu_custom_call.1']
    #allocation4 [shape = 'u8[32768]{0}', space=vmem, size = 0x8000, scoped, tag = 'input window, operand 5, single buffered']
    #allocation5 [shape = 's32[1]{0}', space=sflag, size = 0x4, scoped, tag = 'scoped memory for tpu_custom_call.1']
    #allocation6 [shape = 'u8[32768]{0}', space=vmem, size = 0x8000, scoped, tag = 'input window, operand 7, single buffered']
    %16 = vsyncpa [#allocation3], 0
    %17 = vsyncpa [#allocation5], 0
    // Predicated region
    $region2: #{tpu_custom_call.1} parent=1 // pred_check
      _
    $region3: #{tpu_custom_call.1} parent=1 // pred_check_branch
      %19 = sbr.rel (0) target = $region5
    $region4: #{tpu_custom_call.1} parent=1 // pred_region
      _
    $region5: #{tpu_custom_call.1} parent=1 // pred_fallthru
      _
    // Predicated region
    $region6: #{tpu_custom_call.1} parent=1 // pred_check
      _
    $region7: #{tpu_custom_call.1} parent=1 // pred_check_branch
      %21 = sbr.rel (0) target = $region9
    $region8: #{tpu_custom_call.1} parent=1 // pred_region
      %s23 = ssub.s32 64, 64
      %24 = vsyncadd [#allocation3], %s23
      %s26 = sshll.u32 [#allocation2], 4
      %s27 = int_to_ptr.vmem [resolvable:$true] %s26
      %29 = dma.hbm_to_vmem [thread:$0]  %s1, 64, %s27, [#allocation3]
    $region9: #{tpu_custom_call.1} parent=1 // pred_fallthru
      _
    // Predicated region
    $region10: #{tpu_custom_call.1} parent=1 // pred_check
      _
    $region11: #{tpu_custom_call.1} parent=1 // pred_check_branch
      %31 = sbr.rel (0) target = $region13
    $region12: #{tpu_custom_call.1} parent=1 // pred_region
      _
    $region13: #{tpu_custom_call.1} parent=1 // pred_fallthru
      _
    // Predicated region
    $region14: #{tpu_custom_call.1} parent=1 // pred_check
      _
    $region15: #{tpu_custom_call.1} parent=1 // pred_check_branch
      %33 = sbr.rel (0) target = $region17
    $region16: #{tpu_custom_call.1} parent=1 // pred_region
      _
    $region17: #{tpu_custom_call.1} parent=1 // pred_fallthru
      _
    // Predicated region
    $region18: #{tpu_custom_call.1} parent=1 // pred_check
      _
    $region19: #{tpu_custom_call.1} parent=1 // pred_check_branch
      %35 = sbr.rel (0) target = $region21
    $region20: #{tpu_custom_call.1} parent=1 // pred_region
      _
    $region21: #{tpu_custom_call.1} parent=1 // pred_fallthru
      _
    // Predicated region
    $region22: #{tpu_custom_call.1} parent=1 // pred_check
      _
    $region23: #{tpu_custom_call.1} parent=1 // pred_check_branch
      %37 = sbr.rel (0) target = $region25
    $region24: #{tpu_custom_call.1} parent=1 // pred_region
      %s39 = ssub.s32 1024, 1024
      %40 = vsyncadd [#allocation5], %s39
      %s41 = sshll.u32 [#allocation4], 4
      %s42 = int_to_ptr.vmem [resolvable:$true] %s41
      %47 = dma.hbm_to_vmem [thread:$0]  %s5, 1024, %s42, [#allocation5], 64, 64, 4
    $region25: #{tpu_custom_call.1} parent=1 // pred_fallthru
      _
    // Predicated region
    $region26: #{tpu_custom_call.1} parent=1 // pred_check
      _
    $region27: #{tpu_custom_call.1} parent=1 // pred_check_branch
      %49 = sbr.rel (0) target = $region29
    $region28: #{tpu_custom_call.1} parent=1 // pred_region
      _
    $region29: #{tpu_custom_call.1} parent=1 // pred_fallthru
      _
    // Predicated region
    $region30: #{tpu_custom_call.1} parent=1 // pred_check
      _
    $region31: #{tpu_custom_call.1} parent=1 // pred_check_branch
      %51 = sbr.rel (0) target = $region33
    $region32: #{tpu_custom_call.1} parent=1 // pred_region
      %s53 = ssub.s32 1024, 1024
      %54 = vsyncadd [#allocation5], %s53
      %s55 = sshll.u32 [#allocation6], 4
      %s56 = int_to_ptr.vmem [resolvable:$true] %s55
      %61 = dma.hbm_to_vmem [thread:$0]  %s7, 1024, %s56, [#allocation5], 64, 64, 4
    $region33: #{tpu_custom_call.1} parent=1 // pred_fallthru
      _
    // Predicated region
    $region34: #{tpu_custom_call.1} parent=1 // pred_check
      _
    $region35: #{tpu_custom_call.1} parent=1 // pred_check_branch
      %63 = sbr.rel (0) target = $region37
    $region36: #{tpu_custom_call.1} parent=1 // pred_region
      _
    $region37: #{tpu_custom_call.1} parent=1 // pred_fallthru
      _
    // Predicated region
    $region38: #{tpu_custom_call.1} parent=1 // pred_check
      _
    $region39: #{tpu_custom_call.1} parent=1 // pred_check_branch
      %65 = sbr.rel (0) target = $region41
    $region40: #{tpu_custom_call.1} parent=1 // pred_region
      _
    $region41: #{tpu_custom_call.1} parent=1 // pred_fallthru
      _
    // Predicated region
    $region42: #{tpu_custom_call.1} parent=1 // pred_check
      _
    $region43: #{tpu_custom_call.1} parent=1 // pred_check_branch
      %67 = sbr.rel (0) target = $region45
    $region44: #{tpu_custom_call.1} parent=1 // pred_region
      _
    $region45: #{tpu_custom_call.1} parent=1 // pred_fallthru
      _
    // Predicated region
    $region46: #{tpu_custom_call.1} parent=1 // pred_check
      _
    $region47: #{tpu_custom_call.1} parent=1 // pred_check_branch
      %69 = sbr.rel (0) target = $region49
    $region48: #{tpu_custom_call.1} parent=1 // pred_region
      %70 = dma.done [#allocation3], 64
    $region49: #{tpu_custom_call.1} parent=1 // pred_fallthru
      _
    // Predicated region
    $region50: #{tpu_custom_call.1} parent=1 // pred_check
      _
    $region51: #{tpu_custom_call.1} parent=1 // pred_check_branch
      %72 = sbr.rel (0) target = $region53
    $region52: #{tpu_custom_call.1} parent=1 // pred_region
      %73 = dma.done [#allocation5], 1024
    $region53: #{tpu_custom_call.1} parent=1 // pred_fallthru
      _
    // Predicated region
    $region54: #{tpu_custom_call.1} parent=1 // pred_check
      _
    $region55: #{tpu_custom_call.1} parent=1 // pred_check_branch
      %75 = sbr.rel (0) target = $region57
    $region56: #{tpu_custom_call.1} parent=1 // pred_region
      %76 = dma.done [#allocation5], 1024
    $region57: #{tpu_custom_call.1} parent=1 // pred_fallthru
      _
    %v78 = vld [vmem:[%s0] sm:$0xf]
    %v79 = vld [vmem:[#allocation2] sm:$0xf]
    %v80 = vld [vmem:[%s2] sm:$0x1]
    %v82 = vlaneseq
    %v83 = vshrl.u32 %v82, 7
    %v84 = vsub.s32 0, %v83
    %v85 = vrot.slane %v80, %v84
    %vm87 = vcmask 64512
    %v89 = vsel %vm87, %v78, 0
    %vm91 = vcmask 1043456
    %v93 = vsel %vm91, %v79, 0
    %95 = vmatprep.subr.bf16.mxu0 0
    %96 = vmatpush1.bf16.msra.mxu0 0
    %97 = vmatprep.subr.bf16.mxu0 0
    %98 = vmatpush1.bf16.msra.mxu0 0
    %99 = vmatprep.subr.bf16.mxu0 0
    %100 = vmatpush1.bf16.msra.mxu0 0
    %101 = vmatprep.subr.bf16.mxu0 0
    %102 = vmatpush1.bf16.msra.mxu0 0
    %103 = vmatprep.subr.bf16.mxu0 0
    %104 = vmatpush1.bf16.msra.mxu0 0
    %105 = vmatprep.subr.bf16.mxu0 0
    %106 = vmatpush1.bf16.msra.mxu0 0
    %107 = vmatprep.subr.bf16.mxu0 0
    %108 = vmatpush1.bf16.msra.mxu0 0
    %109 = vmatprep.subr.bf16.mxu0 0
    %110 = vmatpush1.bf16.msra.mxu0 %v93
    %111 = vmatprep.subr.bf16.mxu0 0
    %112 = vmatpush2.bf16.msra.mxu0 0
    %113 = vmatprep.subr.bf16.mxu0 0
    %114 = vmatpush2.bf16.msra.mxu0 0
    %115 = vmatprep.subr.bf16.mxu0 0
    %116 = vmatpush2.bf16.msra.mxu0 0
    %117 = vmatprep.subr.bf16.mxu0 0
    %118 = vmatpush2.bf16.msra.mxu0 0
    %119 = vmatprep.subr.bf16.mxu0 0
    %120 = vmatpush2.bf16.msra.mxu0 0
    %121 = vmatprep.subr.bf16.mxu0 0
    %122 = vmatpush2.bf16.msra.mxu0 0
    %123 = vmatprep.subr.bf16.mxu0 0
    %124 = vmatpush2.bf16.msra.mxu0 0
    %125 = vmatprep.subr.bf16.mxu0 0
    %126 = vmatpush2.bf16.msra.mxu0 0
    %127 = vmatprep.mubr.bf16.mxu0 0
    %128 = vmatmul.mubr.bf16.gmra.mxu0 %v89
    %v129 = vpop.f32.mrf.mxu0
    %v130 = vadd.f32 %v85, %v129
    %v131 = vpop.f32.mrf.mxu0
    %v132 = vpop.f32.mrf.mxu0
    %v133 = vpop.f32.mrf.mxu0
    %134 = vdwg.mxu0
    %v135 = vmax.f32 %v130, 0.0
    %v136 = vpack.c.bf16 %v135, %v135
    %v137 = vld [vmem:[%s3] sm:$0xf]
    %v138 = vld [vmem:[%s3 + $0x4] sm:$0xf]
    %v139 = vld [vmem:[%s3 + $0x8] sm:$0xf]
    %v140 = vld [vmem:[%s3 + $0xc] sm:$0xf]
    %v141 = vld [vmem:[%s3 + $0x10] sm:$0xf]
    %v142 = vld [vmem:[%s3 + $0x14] sm:$0xf]
    %v143 = vld [vmem:[%s3 + $0x18] sm:$0xf]
    %v144 = vld [vmem:[%s3 + $0x1c] sm:$0xf]
    %v145 = vld [vmem:[%s3 + $0x20] sm:$0xf]
    %v146 = vld [vmem:[%s3 + $0x24] sm:$0xf]
    %v147 = vld [vmem:[%s3 + $0x28] sm:$0xf]
    %v148 = vld [vmem:[%s3 + $0x2c] sm:$0xf]
    %v149 = vld [vmem:[%s3 + $0x30] sm:$0xf]
    %v150 = vld [vmem:[%s3 + $0x34] sm:$0xf]
    %v151 = vld [vmem:[%s3 + $0x38] sm:$0xf]
    %v152 = vld [vmem:[%s3 + $0x3c] sm:$0xf]
    %v153 = vld [vmem:[%s4] sm:$0x1]
    %v155 = vlaneseq
    %v156 = vshrl.u32 %v155, 7
    %v157 = vsub.s32 0, %v156
    %v158 = vrot.slane %v153, %v157
    %v176 = vunpack.c.l.b16 %v137
    %v177 = vunpack.c.l.b16 %v138
    %v178 = vunpack.c.l.b16 %v139
    %v179 = vunpack.c.l.b16 %v140
    %v180 = vunpack.c.l.b16 %v141
    %v181 = vunpack.c.l.b16 %v142
    %v182 = vunpack.c.l.b16 %v143
    %v183 = vunpack.c.l.b16 %v144
    %v184 = vunpack.c.l.b16 %v145
    %v185 = vunpack.c.l.b16 %v146
    %v186 = vunpack.c.l.b16 %v147
    %v187 = vunpack.c.l.b16 %v148
    %v188 = vunpack.c.l.b16 %v149
    %v189 = vunpack.c.l.b16 %v150
    %v190 = vunpack.c.l.b16 %v151
    %v191 = vunpack.c.l.b16 %v152
    %v192 = vpack.c.b16 %v177, %v176
    %v193 = vpack.c.b16 %v179, %v178
    %v194 = vpack.c.b16 %v181, %v180
    %v195 = vpack.c.b16 %v183, %v182
    %v196 = vpack.c.b16 %v185, %v184
    %v197 = vpack.c.b16 %v187, %v186
    %v198 = vpack.c.b16 %v189, %v188
    %v199 = vpack.c.b16 %v191, %v190
    %208 = vmatprep.subr.bf16.mxu0 0
    %209 = vmatpush1.bf16.msra.mxu0 %v199
    %210 = vmatprep.subr.bf16.mxu0 0
    %211 = vmatpush1.bf16.msra.mxu0 %v198
    %212 = vmatprep.subr.bf16.mxu0 0
    %213 = vmatpush1.bf16.msra.mxu0 %v197
    %214 = vmatprep.subr.bf16.mxu0 0
    %215 = vmatpush1.bf16.msra.mxu0 %v196
    %216 = vmatprep.subr.bf16.mxu0 0
    %217 = vmatpush1.bf16.msra.mxu0 %v195
    %218 = vmatprep.subr.bf16.mxu0 0
    %219 = vmatpush1.bf16.msra.mxu0 %v194
    %220 = vmatprep.subr.bf16.mxu0 0
    %221 = vmatpush1.bf16.msra.mxu0 %v193
    %222 = vmatprep.subr.bf16.mxu0 0
    %223 = vmatpush1.bf16.msra.mxu0 %v192
    %224 = vmatprep.subr.bf16.mxu0 0
    %225 = vmatpush2.bf16.msra.mxu0 0
    %226 = vmatprep.subr.bf16.mxu0 0
    %227 = vmatpush2.bf16.msra.mxu0 0
    %228 = vmatprep.subr.bf16.mxu0 0
    %229 = vmatpush2.bf16.msra.mxu0 0
    %230 = vmatprep.subr.bf16.mxu0 0
    %231 = vmatpush2.bf16.msra.mxu0 0
    %232 = vmatprep.subr.bf16.mxu0 0
    %233 = vmatpush2.bf16.msra.mxu0 0
    %234 = vmatprep.subr.bf16.mxu0 0
    %235 = vmatpush2.bf16.msra.mxu0 0
    %236 = vmatprep.subr.bf16.mxu0 0
    %237 = vmatpush2.bf16.msra.mxu0 0
    %238 = vmatprep.subr.bf16.mxu0 0
    %239 = vmatpush2.bf16.msra.mxu0 0
    %240 = vmatprep.mubr.bf16.mxu0 0
    %241 = vmatmul.mubr.bf16.gmra.mxu0 %v136
    %v242 = vpop.f32.mrf.mxu0
    %v243 = vadd.f32 %v158, %v242
    %v244 = vpop.f32.mrf.mxu0
    %v245 = vpop.f32.mrf.mxu0
    %v246 = vpop.f32.mrf.mxu0
    %247 = vdwg.mxu0
    %v248 = vmax.f32 %v243, 0.0
    %v249 = vpack.c.bf16 %v248, %v248
    %v250 = vld [vmem:[#allocation4] sm:$0xf]
    %v251 = vld [vmem:[#allocation4 + $0x4] sm:$0xf]
    %v252 = vld [vmem:[#allocation4 + $0x8] sm:$0xf]
    %v253 = vld [vmem:[#allocation4 + $0xc] sm:$0xf]
    %v254 = vld [vmem:[#allocation4 + $0x10] sm:$0xf]
    %v255 = vld [vmem:[#allocation4 + $0x14] sm:$0xf]
    %v256 = vld [vmem:[#allocation4 + $0x18] sm:$0xf]
    %v257 = vld [vmem:[#allocation4 + $0x1c] sm:$0xf]
    %v258 = vld [vmem:[#allocation4 + $0x20] sm:$0xf]
    %v259 = vld [vmem:[#allocation4 + $0x24] sm:$0xf]
    %v260 = vld [vmem:[#allocation4 + $0x28] sm:$0xf]
    %v261 = vld [vmem:[#allocation4 + $0x2c] sm:$0xf]
    %v262 = vld [vmem:[#allocation4 + $0x30] sm:$0xf]
    %v263 = vld [vmem:[#allocation4 + $0x34] sm:$0xf]
    %v264 = vld [vmem:[#allocation4 + $0x38] sm:$0xf]
    %v265 = vld [vmem:[#allocation4 + $0x3c] sm:$0xf]
    %v266 = vld [vmem:[%s6] sm:$0x1]
    %v268 = vlaneseq
    %v269 = vshrl.u32 %v268, 7
    %v270 = vsub.s32 0, %v269
    %v271 = vrot.slane %v266, %v270
    %v289 = vunpack.c.l.b16 %v250
    %v290 = vunpack.c.l.b16 %v251
    %v291 = vunpack.c.l.b16 %v252
    %v292 = vunpack.c.l.b16 %v253
    %v293 = vunpack.c.l.b16 %v254
    %v294 = vunpack.c.l.b16 %v255
    %v295 = vunpack.c.l.b16 %v256
    %v296 = vunpack.c.l.b16 %v257
    %v297 = vunpack.c.l.b16 %v258
    %v298 = vunpack.c.l.b16 %v259
    %v299 = vunpack.c.l.b16 %v260
    %v300 = vunpack.c.l.b16 %v261
    %v301 = vunpack.c.l.b16 %v262
    %v302 = vunpack.c.l.b16 %v263
    %v303 = vunpack.c.l.b16 %v264
    %v304 = vunpack.c.l.b16 %v265
    %v305 = vpack.c.b16 %v290, %v289
    %v306 = vpack.c.b16 %v292, %v291
    %v307 = vpack.c.b16 %v294, %v293
    %v308 = vpack.c.b16 %v296, %v295
    %v309 = vpack.c.b16 %v298, %v297
    %v310 = vpack.c.b16 %v300, %v299
    %v311 = vpack.c.b16 %v302, %v301
    %v312 = vpack.c.b16 %v304, %v303
    %321 = vmatprep.subr.bf16.mxu0 0
    %322 = vmatpush1.bf16.msra.mxu0 %v312
    %323 = vmatprep.subr.bf16.mxu0 0
    %324 = vmatpush1.bf16.msra.mxu0 %v311
    %325 = vmatprep.subr.bf16.mxu0 0
    %326 = vmatpush1.bf16.msra.mxu0 %v310
    %327 = vmatprep.subr.bf16.mxu0 0
    %328 = vmatpush1.bf16.msra.mxu0 %v309
    %329 = vmatprep.subr.bf16.mxu0 0
    %330 = vmatpush1.bf16.msra.mxu0 %v308
    %331 = vmatprep.subr.bf16.mxu0 0
    %332 = vmatpush1.bf16.msra.mxu0 %v307
    %333 = vmatprep.subr.bf16.mxu0 0
    %334 = vmatpush1.bf16.msra.mxu0 %v306
    %335 = vmatprep.subr.bf16.mxu0 0
    %336 = vmatpush1.bf16.msra.mxu0 %v305
    %337 = vmatprep.subr.bf16.mxu0 0
    %338 = vmatpush2.bf16.msra.mxu0 0
    %339 = vmatprep.subr.bf16.mxu0 0
    %340 = vmatpush2.bf16.msra.mxu0 0
    %341 = vmatprep.subr.bf16.mxu0 0
    %342 = vmatpush2.bf16.msra.mxu0 0
    %343 = vmatprep.subr.bf16.mxu0 0
    %344 = vmatpush2.bf16.msra.mxu0 0
    %345 = vmatprep.subr.bf16.mxu0 0
    %346 = vmatpush2.bf16.msra.mxu0 0
    %347 = vmatprep.subr.bf16.mxu0 0
    %348 = vmatpush2.bf16.msra.mxu0 0
    %349 = vmatprep.subr.bf16.mxu0 0
    %350 = vmatpush2.bf16.msra.mxu0 0
    %351 = vmatprep.subr.bf16.mxu0 0
    %352 = vmatpush2.bf16.msra.mxu0 0
    %353 = vmatprep.mubr.bf16.mxu0 0
    %354 = vmatmul.mubr.bf16.gmra.mxu0 %v249
    %v355 = vpop.f32.mrf.mxu0
    %v356 = vadd.f32 %v271, %v355
    %v357 = vpop.f32.mrf.mxu0
    %v358 = vpop.f32.mrf.mxu0
    %v359 = vpop.f32.mrf.mxu0
    %360 = vdwg.mxu0
    %v361 = vmax.f32 %v356, 0.0
    %v362 = vpack.c.bf16 %v361, %v361
    %v363 = vld [vmem:[#allocation6] sm:$0xf]
    %v364 = vld [vmem:[#allocation6 + $0x4] sm:$0xf]
    %v365 = vld [vmem:[#allocation6 + $0x8] sm:$0xf]
    %v366 = vld [vmem:[#allocation6 + $0xc] sm:$0xf]
    %v367 = vld [vmem:[#allocation6 + $0x10] sm:$0xf]
    %v368 = vld [vmem:[#allocation6 + $0x14] sm:$0xf]
    %v369 = vld [vmem:[#allocation6 + $0x18] sm:$0xf]
    %v370 = vld [vmem:[#allocation6 + $0x1c] sm:$0xf]
    %v371 = vld [vmem:[#allocation6 + $0x20] sm:$0xf]
    %v372 = vld [vmem:[#allocation6 + $0x24] sm:$0xf]
    %v373 = vld [vmem:[#allocation6 + $0x28] sm:$0xf]
    %v374 = vld [vmem:[#allocation6 + $0x2c] sm:$0xf]
    %v375 = vld [vmem:[#allocation6 + $0x30] sm:$0xf]
    %v376 = vld [vmem:[#allocation6 + $0x34] sm:$0xf]
    %v377 = vld [vmem:[#allocation6 + $0x38] sm:$0xf]
    %v378 = vld [vmem:[#allocation6 + $0x3c] sm:$0xf]
    %v379 = vld [vmem:[%s8] sm:$0x1]
    %v381 = vlaneseq
    %v382 = vshrl.u32 %v381, 7
    %v383 = vsub.s32 0, %v382
    %v384 = vrot.slane %v379, %v383
    %v402 = vunpack.c.l.b16 %v363
    %v403 = vunpack.c.l.b16 %v364
    %v404 = vunpack.c.l.b16 %v365
    %v405 = vunpack.c.l.b16 %v366
    %v406 = vunpack.c.l.b16 %v367
    %v407 = vunpack.c.l.b16 %v368
    %v408 = vunpack.c.l.b16 %v369
    %v409 = vunpack.c.l.b16 %v370
    %v410 = vunpack.c.l.b16 %v371
    %v411 = vunpack.c.l.b16 %v372
    %v412 = vunpack.c.l.b16 %v373
    %v413 = vunpack.c.l.b16 %v374
    %v414 = vunpack.c.l.b16 %v375
    %v415 = vunpack.c.l.b16 %v376
    %v416 = vunpack.c.l.b16 %v377
    %v417 = vunpack.c.l.b16 %v378
    %v418 = vpack.c.b16 %v403, %v402
    %v419 = vpack.c.b16 %v405, %v404
    %v420 = vpack.c.b16 %v407, %v406
    %v421 = vpack.c.b16 %v409, %v408
    %v422 = vpack.c.b16 %v411, %v410
    %v423 = vpack.c.b16 %v413, %v412
    %v424 = vpack.c.b16 %v415, %v414
    %v425 = vpack.c.b16 %v417, %v416
    %434 = vmatprep.subr.bf16.mxu0 0
    %435 = vmatpush1.bf16.msra.mxu0 %v425
    %436 = vmatprep.subr.bf16.mxu0 0
    %437 = vmatpush1.bf16.msra.mxu0 %v424
    %438 = vmatprep.subr.bf16.mxu0 0
    %439 = vmatpush1.bf16.msra.mxu0 %v423
    %440 = vmatprep.subr.bf16.mxu0 0
    %441 = vmatpush1.bf16.msra.mxu0 %v422
    %442 = vmatprep.subr.bf16.mxu0 0
    %443 = vmatpush1.bf16.msra.mxu0 %v421
    %444 = vmatprep.subr.bf16.mxu0 0
    %445 = vmatpush1.bf16.msra.mxu0 %v420
    %446 = vmatprep.subr.bf16.mxu0 0
    %447 = vmatpush1.bf16.msra.mxu0 %v419
    %448 = vmatprep.subr.bf16.mxu0 0
    %449 = vmatpush1.bf16.msra.mxu0 %v418
    %450 = vmatprep.subr.bf16.mxu0 0
    %451 = vmatpush2.bf16.msra.mxu0 0
    %452 = vmatprep.subr.bf16.mxu0 0
    %453 = vmatpush2.bf16.msra.mxu0 0
    %454 = vmatprep.subr.bf16.mxu0 0
    %455 = vmatpush2.bf16.msra.mxu0 0
    %456 = vmatprep.subr.bf16.mxu0 0
    %457 = vmatpush2.bf16.msra.mxu0 0
    %458 = vmatprep.subr.bf16.mxu0 0
    %459 = vmatpush2.bf16.msra.mxu0 0
    %460 = vmatprep.subr.bf16.mxu0 0
    %461 = vmatpush2.bf16.msra.mxu0 0
    %462 = vmatprep.subr.bf16.mxu0 0
    %463 = vmatpush2.bf16.msra.mxu0 0
    %464 = vmatprep.subr.bf16.mxu0 0
    %465 = vmatpush2.bf16.msra.mxu0 0
    %466 = vmatprep.mubr.bf16.mxu0 0
    %467 = vmatmul.mubr.bf16.gmra.mxu0 %v362
    %v468 = vpop.f32.mrf.mxu0
    %v469 = vadd.f32 %v384, %v468
    %v470 = vpop.f32.mrf.mxu0
    %v471 = vpop.f32.mrf.mxu0
    %v472 = vpop.f32.mrf.mxu0
    %473 = vdwg.mxu0
    %v474 = vmax.f32 %v469, 0.0
    %v475 = vpack.c.bf16 %v474, %v474
    %v476 = vld [vmem:[%s9] sm:$0xf]
    %v477 = vld [vmem:[%s9 + $0x4] sm:$0xf]
    %v478 = vld [vmem:[%s9 + $0x8] sm:$0xf]
    %v479 = vld [vmem:[%s9 + $0xc] sm:$0xf]
    %v480 = vld [vmem:[%s9 + $0x10] sm:$0xf]
    %v481 = vld [vmem:[%s9 + $0x14] sm:$0xf]
    %v482 = vld [vmem:[%s9 + $0x18] sm:$0xf]
    %v483 = vld [vmem:[%s9 + $0x1c] sm:$0xf]
    %v484 = vld [vmem:[%s9 + $0x20] sm:$0xf]
    %v485 = vld [vmem:[%s9 + $0x24] sm:$0xf]
    %v486 = vld [vmem:[%s9 + $0x28] sm:$0xf]
    %v487 = vld [vmem:[%s9 + $0x2c] sm:$0xf]
    %v488 = vld [vmem:[%s9 + $0x30] sm:$0xf]
    %v489 = vld [vmem:[%s9 + $0x34] sm:$0xf]
    %v490 = vld [vmem:[%s9 + $0x38] sm:$0xf]
    %v491 = vld [vmem:[%s9 + $0x3c] sm:$0xf]
    %v492 = vld [vmem:[%s10] sm:$0x1]
    %v494 = vlaneseq
    %v495 = vshrl.u32 %v494, 7
    %v496 = vsub.s32 0, %v495
    %v497 = vrot.slane %v492, %v496
    %v515 = vunpack.c.l.b16 %v476
    %v516 = vunpack.c.l.b16 %v477
    %v517 = vunpack.c.l.b16 %v478
    %v518 = vunpack.c.l.b16 %v479
    %v519 = vunpack.c.l.b16 %v480
    %v520 = vunpack.c.l.b16 %v481
    %v521 = vunpack.c.l.b16 %v482
    %v522 = vunpack.c.l.b16 %v483
    %v523 = vunpack.c.l.b16 %v484
    %v524 = vunpack.c.l.b16 %v485
    %v525 = vunpack.c.l.b16 %v486
    %v526 = vunpack.c.l.b16 %v487
    %v527 = vunpack.c.l.b16 %v488
    %v528 = vunpack.c.l.b16 %v489
    %v529 = vunpack.c.l.b16 %v490
    %v530 = vunpack.c.l.b16 %v491
    %v531 = vpack.c.b16 %v516, %v515
    %v532 = vpack.c.b16 %v518, %v517
    %v533 = vpack.c.b16 %v520, %v519
    %v534 = vpack.c.b16 %v522, %v521
    %v535 = vpack.c.b16 %v524, %v523
    %v536 = vpack.c.b16 %v526, %v525
    %v537 = vpack.c.b16 %v528, %v527
    %v538 = vpack.c.b16 %v530, %v529
    %547 = vmatprep.subr.bf16.mxu0 0
    %548 = vmatpush1.bf16.msra.mxu0 %v538
    %549 = vmatprep.subr.bf16.mxu0 0
    %550 = vmatpush1.bf16.msra.mxu0 %v537
    %551 = vmatprep.subr.bf16.mxu0 0
    %552 = vmatpush1.bf16.msra.mxu0 %v536
    %553 = vmatprep.subr.bf16.mxu0 0
    %554 = vmatpush1.bf16.msra.mxu0 %v535
    %555 = vmatprep.subr.bf16.mxu0 0
    %556 = vmatpush1.bf16.msra.mxu0 %v534
    %557 = vmatprep.subr.bf16.mxu0 0
    %558 = vmatpush1.bf16.msra.mxu0 %v533
    %559 = vmatprep.subr.bf16.mxu0 0
    %560 = vmatpush1.bf16.msra.mxu0 %v532
    %561 = vmatprep.subr.bf16.mxu0 0
    %562 = vmatpush1.bf16.msra.mxu0 %v531
    %563 = vmatprep.subr.bf16.mxu0 0
    %564 = vmatpush2.bf16.msra.mxu0 0
    %565 = vmatprep.subr.bf16.mxu0 0
    %566 = vmatpush2.bf16.msra.mxu0 0
    %567 = vmatprep.subr.bf16.mxu0 0
    %568 = vmatpush2.bf16.msra.mxu0 0
    %569 = vmatprep.subr.bf16.mxu0 0
    %570 = vmatpush2.bf16.msra.mxu0 0
    %571 = vmatprep.subr.bf16.mxu0 0
    %572 = vmatpush2.bf16.msra.mxu0 0
    %573 = vmatprep.subr.bf16.mxu0 0
    %574 = vmatpush2.bf16.msra.mxu0 0
    %575 = vmatprep.subr.bf16.mxu0 0
    %576 = vmatpush2.bf16.msra.mxu0 0
    %577 = vmatprep.subr.bf16.mxu0 0
    %578 = vmatpush2.bf16.msra.mxu0 0
    %579 = vmatprep.mubr.bf16.mxu0 0
    %580 = vmatmul.mubr.bf16.gmra.mxu0 %v475
    %v581 = vpop.f32.mrf.mxu0
    %v582 = vadd.f32 %v497, %v581
    %v583 = vpop.f32.mrf.mxu0
    %v584 = vpop.f32.mrf.mxu0
    %v585 = vpop.f32.mrf.mxu0
    %586 = vdwg.mxu0
    %vm587 = vcmask 31744
    %588 = vst.msk [vmem:[%s11] sm:$0xff] %vm587, %v582
    // Predicated region
    $region58: #{tpu_custom_call.1} parent=1 // pred_check
      _
    $region59: #{tpu_custom_call.1} parent=1 // pred_check_branch
      %590 = sbr.rel (0) target = $region61
    $region60: #{tpu_custom_call.1} parent=1 // pred_region
      _
    $region61: #{tpu_custom_call.1} parent=1 // pred_fallthru
      _
    // Predicated region
    $region62: #{tpu_custom_call.1} parent=1 // pred_check
      _
    $region63: #{tpu_custom_call.1} parent=1 // pred_check_branch
      %592 = sbr.rel (0) target = $region65
    $region64: #{tpu_custom_call.1} parent=1 // pred_region
      _
    $region65: #{tpu_custom_call.1} parent=1 // pred_fallthru
      _
    %593 = vsyncpa [#allocation3], 1
    %594 = vsyncpa [#allocation5], 1

</llo_original>
